<compile_context>
chip_gen: v6e
topology: v6e:2x2x1
jax: 0.10.0
libtpu: 0.0.40
codegen_flags: <defaults>
</compile_context>

<pallas_src>
import jax
import jax.numpy as jnp
from jax.experimental import pallas as pl
from jax.experimental.pallas import tpu as pltpu

_MIB = 1024 * 1024


def _actnorm_kernel(scale_ref, loc_ref, x_ref, o_ref):
    # scale_ref / loc_ref broadcast against the x tile:
    #   channel-rows layout:  (TM, 1) params vs (TM, TL) x
    #   channel-lanes layout: (1, TL) params vs (TM, TL) x
    o_ref[...] = (scale_ref[...] * (x_ref[...] + loc_ref[...])).astype(o_ref.dtype)


def _vmem_capacity_bytes():
    cap = 64 * _MIB  # conservative default (v7x per-TensorCore VMEM)
    try:
        info = pltpu.get_tpu_info()
        v = getattr(info, "vmem_capacity_bytes", None)
        if v:
            cap = int(v)
    except Exception:
        pass
    return cap


def _sublane_pack(dtype):
    # Rows per packed sublane group: f32 -> 8, bf16 -> 16, int8/fp8 -> 32.
    itemsize = jnp.dtype(dtype).itemsize
    return max(8, 32 // max(1, itemsize))


def _pick_row_tile(rows, pack, max_rows):
    """Largest pack-aligned row tile <= max_rows, preferring divisors of rows."""
    if max_rows >= rows:
        return rows
    t = max(pack, (max_rows // pack) * pack)
    cand = t
    for _ in range(64):  # bounded trace-time search for a clean divisor
        if cand < pack:
            break
        if rows % cand == 0:
            return cand
        cand -= pack
    return min(t, rows)  # accept one masked tail block


def _pick_lane_tile(lanes, max_lanes):
    """Largest 128-aligned lane tile <= max_lanes, preferring divisors of lanes."""
    upper = min(max_lanes, (lanes // 128) * 128)
    upper = max(128, (upper // 128) * 128)
    cand = upper
    for _ in range(256):
        if cand < 128:
            break
        if lanes % cand == 0:
            return cand
        cand -= 128
    return upper  # accept one masked tail block


def actnorm_forward(x, loc, scale, *, logdet=False, donate_x=False):
    """ActNorm forward: scale * (x + loc) with per-channel loc/scale.

    Args:
      x:      (N, C, H, W) activations (NCHW) or (N, C) (treated as (N, C, 1, 1)).
      loc:    (1, C, 1, 1) shift parameter.
      scale:  (1, C, 1, 1) scale parameter.
      logdet: if True also return H*W*sum(log|scale|) broadcast to (N,).
      donate_x: alias x's buffer to the output (use only if x is donated).
    """
    squeeze = False
    if x.ndim == 2:
        N, C = x.shape
        H = W = 1
        x4 = x.reshape(N, C, 1, 1)
        squeeze = True
    else:
        N, C, H, W = x.shape
        x4 = x

    hw = H * W
    itemsize = jnp.dtype(x.dtype).itemsize
    pack = _sublane_pack(x.dtype)

    # Generation-aware budgets.
    cap = _vmem_capacity_bytes()
    target_tile_bytes = int(max(2 * _MIB, min(8 * _MIB, cap // 10)))
    vmem_limit_bytes = int(min(cap * 3 // 4, 5 * target_tile_bytes + 4 * _MIB))

    scale_c = scale.reshape(C).astype(jnp.float32)
    loc_c = loc.reshape(C).astype(jnp.float32)

    # Layout choice:
    #  * hw a multiple of 128  -> "channel-rows": (N*C, H*W), params (N*C, 1).
    #  * otherwise (incl. 2-D) -> "channel-lanes": (N, C*H*W), params (1, C*H*W),
    #    so stores stay lane-dense even for small / odd spatial dims.
    use_channel_lanes = (hw % 128) != 0

    if use_channel_lanes:
        rows = N
        lanes = C * hw
        x_rows = x4.reshape(rows, lanes)            # pure row-major reshape
        scale_p = jnp.repeat(scale_c, hw).reshape(1, lanes)
        loc_p = jnp.repeat(loc_c, hw).reshape(1, lanes)
    else:
        rows = N * C
        lanes = hw
        x_rows = x4.reshape(rows, lanes)            # pure row-major reshape
        scale_p = jnp.tile(scale_c, N).reshape(rows, 1)
        loc_p = jnp.tile(loc_c, N).reshape(rows, 1)

    # Tile selection.
    row_bytes = lanes * itemsize
    if row_bytes * pack > target_tile_bytes and lanes > 128:
        # Even a minimal sublane-aligned block is too big: add a lane grid axis.
        max_tl = max(128, (target_tile_bytes // (pack * itemsize)) // 128 * 128)
        tl = _pick_lane_tile(lanes, max_tl)
        tm = pack if rows >= pack else rows
    else:
        tl = lanes
        max_tm = max(1, target_tile_bytes // max(1, row_bytes))
        tm = _pick_row_tile(rows, pack, max_tm)

    # Megacore: keep >= 2 parallel blocks for mid-size inputs so both v7x
    # TensorCores stream (tiny inputs stay as a single block).
    total_bytes = rows * lanes * itemsize
    if tm >= rows and tl >= lanes and total_bytes > (1 << 20):
        if rows >= 2 * pack and (rows // 2) % pack == 0:
            tm = rows // 2
        elif lanes % 256 == 0:
            tl = lanes // 2

    grid = (pl.cdiv(rows, tm), pl.cdiv(lanes, tl))

    if use_channel_lanes:
        p_spec = pl.BlockSpec((1, tl), lambda i, k: (0, k))
    else:
        p_spec = pl.BlockSpec((tm, 1), lambda i, k: (i, 0))
    x_spec = pl.BlockSpec((tm, tl), lambda i, k: (i, k))

    flops = 2 * rows * lanes
    bytes_accessed = 2 * rows * lanes * itemsize + (scale_p.size + loc_p.size) * 4

    extra_kwargs = {}
    if donate_x:
        extra_kwargs["input_output_aliases"] = {2: 0}

    h_rows = pl.pallas_call(
        _actnorm_kernel,
        out_shape=jax.ShapeDtypeStruct((rows, lanes), x.dtype),
        grid_spec=pltpu.PrefetchScalarGridSpec(
            num_scalar_prefetch=0,
            grid=grid,
            in_specs=[p_spec, p_spec, x_spec],
            out_specs=x_spec,
        ),
        compiler_params=pltpu.CompilerParams(
            dimension_semantics=("parallel", "parallel"),
            vmem_limit_bytes=vmem_limit_bytes,
        ),
        cost_estimate=pl.CostEstimate(
            flops=flops, transcendentals=0, bytes_accessed=bytes_accessed
        ),
        **extra_kwargs,
    )(scale_p, loc_p, x_rows)

    h = h_rows.reshape(N, C, H, W)
    if squeeze:
        h = h.reshape(N, C)

    if logdet:
        # Tiny C-length parameter reduction: plain-JAX glue.
        log_abs = jnp.log(jnp.abs(scale.reshape(-1).astype(jnp.float32)))
        ld = (H * W) * jnp.sum(log_abs)
        ld = ld * jnp.ones((N,), dtype=x.dtype)
        return h, ld
    return h


def actnorm_reference(x, loc, scale, *, logdet=False):
    """Pure-JAX reference mirroring the PyTorch forward."""
    squeeze = False
    if x.ndim == 2:
        x = x[:, :, None, None]
        squeeze = True
    _, _, H, W = x.shape
    h = scale * (x + loc)
    if squeeze:
        h = h[:, :, 0, 0]
    if logdet:
        log_abs = jnp.log(jnp.abs(scale))
        ld = H * W * jnp.sum(log_abs)
        ld = ld * jnp.ones((x.shape[0],), dtype=x.dtype)
        return h, ld
    return h


if __name__ == "__main__":
    key = jax.random.PRNGKey(0)
    k_x, k_loc, k_scale, k_x2, k_x3 = jax.random.split(key, 5)

    N, C, H, W = 2, 4, 16, 16
    x = jax.random.normal(k_x, (N, C, H, W), dtype=jnp.float32)

    # Deterministic, non-trivial parameters with the module's shapes:
    loc = 0.1 * jax.random.normal(k_loc, (1, C, 1, 1), dtype=jnp.float32)
    scale = 1.0 + 0.1 * jax.random.normal(k_scale, (1, C, 1, 1), dtype=jnp.float32)

    # logdet=False path (module default): channel-rows layout (hw = 256).
    out = jax.block_until_ready(actnorm_forward(x, loc, scale, logdet=False))
    ref = actnorm_reference(x, loc, scale, logdet=False)
    assert jnp.allclose(out, ref, atol=1e-5, rtol=1e-5), "ActNorm mismatch"

    # logdet=True path (optional constructor flag).
    out_h, out_ld = actnorm_forward(x, loc, scale, logdet=True)
    out_h = jax.block_until_ready(out_h)
    out_ld = jax.block_until_ready(out_ld)
    ref_h, ref_ld = actnorm_reference(x, loc, scale, logdet=True)
    assert jnp.allclose(out_h, ref_h, atol=1e-5, rtol=1e-5)
    assert jnp.allclose(out_ld, ref_ld, atol=1e-4, rtol=1e-5)

    # 2-D input path (input[:, :, None, None] then squeeze): channel-lanes layout.
    x2d = jax.random.normal(k_x2, (N, C), dtype=jnp.float32)
    out2d = jax.block_until_ready(actnorm_forward(x2d, loc, scale))
    ref2d = actnorm_reference(x2d, loc, scale)
    assert jnp.allclose(out2d, ref2d, atol=1e-5, rtol=1e-5)

    # Non-128-multiple spatial dims (7x7 feature maps): channel-lanes layout.
    x77 = jax.random.normal(k_x3, (N, C, 7, 7), dtype=jnp.float32)
    out77 = jax.block_until_ready(actnorm_forward(x77, loc, scale))
    ref77 = actnorm_reference(x77, loc, scale)
    assert jnp.allclose(out77, ref77, atol=1e-5, rtol=1e-5)

    # TODO(synk): training-time data-dependent initialization (per-channel
    # mean/std over N*H*W writing into loc/scale) and the reverse pass are
    # stateful module setup / a separate path, not the steady-state forward
    # hot path; they are left to plain-JAX glue.
    print("KERNEL_OK")
</pallas_src>

<mosaic_0001>
module attributes {stable_mosaic.version = 11 : i64} {
  func.func @_actnorm_kernel(%arg0: i32, %arg1: i32, %arg2: memref<8x1xf32, #tpu.memory_space<vmem>>, %arg3: memref<8x1xf32, #tpu.memory_space<vmem>>, %arg4: memref<8x256xf32, #tpu.memory_space<vmem>>, %arg5: memref<8x256xf32, #tpu.memory_space<vmem>>) attributes {dimension_semantics = [#tpu.dimension_semantics<parallel>, #tpu.dimension_semantics<parallel>], iteration_bounds = array<i64: 1, 1>, scalar_prefetch = 0 : i64, scratch_operands = 0 : i64, tpu.core_type = #tpu.core_type<tc>, window_params = [{transform_indices = @transform_0, window_bounds = array<i64: 8, 1>}, {transform_indices = @transform_1, window_bounds = array<i64: 8, 1>}, {transform_indices = @transform_2, window_bounds = array<i64: 8, 256>}, {transform_indices = @transform_3, window_bounds = array<i64: 8, 256>}]} {
    %c0 = arith.constant 0 : index
    %c0_0 = arith.constant 0 : index
    %0 = vector.load %arg2[%c0, %c0_0] : memref<8x1xf32, #tpu.memory_space<vmem>>, vector<8x1xf32>
    %c0_1 = arith.constant 0 : index
    %c0_2 = arith.constant 0 : index
    %1 = vector.load %arg4[%c0_1, %c0_2] : memref<8x256xf32, #tpu.memory_space<vmem>>, vector<8x256xf32>
    %c0_3 = arith.constant 0 : index
    %c0_4 = arith.constant 0 : index
    %2 = vector.load %arg3[%c0_3, %c0_4] : memref<8x1xf32, #tpu.memory_space<vmem>>, vector<8x1xf32>
    %3 = vector.broadcast %2 : vector<8x1xf32> to vector<8x256xf32>
    %4 = arith.addf %1, %3 : vector<8x256xf32>
    %5 = vector.broadcast %0 : vector<8x1xf32> to vector<8x256xf32>
    %6 = arith.mulf %5, %4 : vector<8x256xf32>
    %c0_5 = arith.constant 0 : index
    %c0_6 = arith.constant 0 : index
    %7 = vector.load %arg5[%c0_5, %c0_6] : memref<8x256xf32, #tpu.memory_space<vmem>>, vector<8x256xf32>
    tpu.vector_store %arg5[%c0_5, %c0_6], %6 {strides = array<i32>} : memref<8x256xf32, #tpu.memory_space<vmem>>, vector<8x256xf32>,
    return
  }
  func.func @transform_0(%arg0: i32, %arg1: i32) -> (i32, i32) {
    %c0_i32 = arith.constant 0 : i32
    %c0_i32_0 = arith.constant 0 : i32
    return %arg0, %c0_i32 : i32, i32
  }
  func.func @transform_1(%arg0: i32, %arg1: i32) -> (i32, i32) {
    %c0_i32 = arith.constant 0 : i32
    %c0_i32_0 = arith.constant 0 : i32
    return %arg0, %c0_i32 : i32, i32
  }
  func.func @transform_2(%arg0: i32, %arg1: i32) -> (i32, i32) {
    %c0_i32 = arith.constant 0 : i32
    return %arg0, %arg1 : i32, i32
  }
  func.func @transform_3(%arg0: i32, %arg1: i32) -> (i32, i32) {
    %c0_i32 = arith.constant 0 : i32
    return %arg0, %arg1 : i32, i32
  }
}

</mosaic_0001>

<llo_original>
// kernel: tpu_custom_call.1
$region0: #{tpu_custom_call.1}
  #allocation0 [shape = 'u32[]', space=smem, size = 0x4, offset = 0x4, fixed_abs, tag = 'smem constant byte address 0x4 - core index']
  #allocation1 [shape = 'u32[144,128]{1,0:T(1,128)}', space=vmem, size = 0x12000, scoped, tag = 'internal scratch']
  %s0 = inlined_call_operand.vmem [shape: f32[8,1], index: 0, kind: input, shape index: {}]
  %s1 = inlined_call_operand.vmem [shape: f32[8,1], index: 1, kind: input, shape index: {}]
  %s2 = inlined_call_operand.vmem [shape: f32[8,256], index: 2, kind: input, shape index: {}]
  %s3 = inlined_call_operand.hbm [shape: f32[8,256], index: 3, kind: output, shape index: {}]
  %s4 = sld [smem:[#allocation0]]
  $region22: #{tpu_custom_call.1} parent=0
    _
  %s6 = ssub.s32 1, %s4
  %s7 = scalar_select 0, %s6, %s4
  $region1: #{tpu_custom_call.1} parent=0
    #allocation2 [shape = 'u8[8192]{0}', space=vmem, size = 0x2000, scoped, tag = 'output window, operand 0, single buffered']
    #allocation3 [shape = 's32[1]{0}', space=sflag, size = 0x4, scoped, tag = 'scoped memory for tpu_custom_call.1']
    %8 = vsyncpa [#allocation3], 0
    // Predicated region
    $region2: #{tpu_custom_call.1} parent=1 // pred_check
      _
    $region3: #{tpu_custom_call.1} parent=1 // pred_check_branch
      %10 = sbr.rel (0) target = $region5
    $region4: #{tpu_custom_call.1} parent=1 // pred_region
      _
    $region5: #{tpu_custom_call.1} parent=1 // pred_fallthru
      _
    // Predicated region
    $region6: #{tpu_custom_call.1} parent=1 // pred_check
      _
    $region7: #{tpu_custom_call.1} parent=1 // pred_check_branch
      %12 = sbr.rel (0) target = $region9
    $region8: #{tpu_custom_call.1} parent=1 // pred_region
      _
    $region9: #{tpu_custom_call.1} parent=1 // pred_fallthru
      _
    // Predicated region
    $region10: #{tpu_custom_call.1} parent=1 // pred_check
      _
    $region11: #{tpu_custom_call.1} parent=1 // pred_check_branch
      %14 = sbr.rel (0) target = $region13
    $region12: #{tpu_custom_call.1} parent=1 // pred_region
      _
    $region13: #{tpu_custom_call.1} parent=1 // pred_fallthru
      _
    %v15 = vld [vmem:[%s0] sm:$0xff]
    %v16 = vld [vmem:[%s2] sm:$0xff]
    %v17 = vld [vmem:[%s2 + $0x8] sm:$0xff]
    %v18 = vld [vmem:[%s1] sm:$0xff]
    %20 = vset.pattern.permute.xlu0 0
    %21 = vperm.xlu0 %20, %v18
    %v22 = vpop.permute.xlu0 %21
    %v24 = vadd.f32 %v16, %v22
    %v25 = vadd.f32 %v17, %v22
    %27 = vset.pattern.permute.xlu0 0
    %28 = vperm.xlu0 %27, %v15
    %v29 = vpop.permute.xlu0 %28
    %v31 = vmul.f32 %v29, %v24
    %v32 = vmul.f32 %v29, %v25
    %33 = vst [vmem:[#allocation2] sm:$0xff] %v31
    %34 = vst [vmem:[#allocation2 + $0x8] sm:$0xff] %v32
    // Predicated region
    $region14: #{tpu_custom_call.1} parent=1 // pred_check
      _
    $region15: #{tpu_custom_call.1} parent=1 // pred_check_branch
      %36 = sbr.rel (0) target = $region17
    $region16: #{tpu_custom_call.1} parent=1 // pred_region
      %s38 = ssub.s32 256, 256
      %39 = vsyncadd [#allocation3], %s38
      %s41 = sshll.u32 [#allocation2], 4
      %s42 = int_to_ptr.vmem [resolvable:$true] %s41
      %44 = dma.vmem_to_hbm [thread:$0]  %s42, 256, %s3, [#allocation3]
    $region17: #{tpu_custom_call.1} parent=1 // pred_fallthru
      _
    // Predicated region
    $region18: #{tpu_custom_call.1} parent=1 // pred_check
      _
    $region19: #{tpu_custom_call.1} parent=1 // pred_check_branch
      %46 = sbr.rel (0) target = $region21
    $region20: #{tpu_custom_call.1} parent=1 // pred_region
      %47 = dma.done [#allocation3], 256
    $region21: #{tpu_custom_call.1} parent=1 // pred_fallthru
      _
    %48 = vsyncpa [#allocation3], 1

</llo_original>
